<compile_context>
chip_gen: v7x
topology: tpu7x:2x2x1
jax: 0.10.0
libtpu: 0.0.40
codegen_flags: <defaults>
</compile_context>

<pallas_src>
import functools

import jax
import jax.numpy as jnp
from jax.experimental import pallas as pl
from jax.experimental.pallas import tpu as pltpu

_LANES = 128


def _round_up(x, m):
    return (x + m - 1) // m * m


def _pad2(a, rows, cols):
    r, c = a.shape
    return jnp.pad(a, ((0, rows - r), (0, cols - c)))


def _fused_graphsage_kernel(x_ref, *refs, n_dst_list):
    """Fused multi-layer SAGEConv('mean') forward.

    refs = (adj_0, wcat_0, b_0, ..., adj_{L-1}, wcat_{L-1}, b_{L-1}, o_ref)
      adj_l  : (n_dst_l, n_src_l)        row-normalized adjacency
      wcat_l : (2*Fp_in_l, Fp_out_l)     [W_self ; W_neigh], zero-padded, stacked on K
      b_l    : (1, Fp_out_l)             zero-padded bias
    All feature dims are padded to multiples of 128; padded columns stay zero
    through every layer (zero weight columns / zero bias / ReLU(0)=0).
    """
    *layer_refs, o_ref = refs
    n_layers = len(n_dst_list)

    h = x_ref[...]                                   # (n_src_0, Fp_0) f32
    for l in range(n_layers):
        adj_ref = layer_refs[3 * l + 0]
        wcat_ref = layer_refs[3 * l + 1]
        b_ref = layer_refs[3 * l + 2]
        n_dst = n_dst_list[l]

        # mean neighbor aggregation on the MXU: (n_dst, n_src) @ (n_src, Fp)
        h_neigh = jnp.dot(adj_ref[...], h, preferred_element_type=jnp.float32)

        # self features = first n_dst rows (DGL block convention), fused with the
        # neighbor features into a single matmul of contraction depth 2*Fp.
        hcat = jnp.concatenate([h[:n_dst, :], h_neigh], axis=-1)   # (n_dst, 2*Fp)
        out = jnp.dot(hcat, wcat_ref[...],
                      preferred_element_type=jnp.float32) + b_ref[...]

        if l != n_layers - 1:
            out = jnp.maximum(out, 0.0)
        # TODO(synk): dropout is identity at inference; training-mode dropout
        # (pltpu.prng_random_bits masking) not implemented.
        h = out

    o_ref[...] = h.astype(o_ref.dtype)


def graphsage_forward(blocks, x, params):
    """Fused GraphSAGE forward.

    blocks : list of row-normalized adjacency matrices (n_dst_l, n_src_l), f32.
    x      : (n_src_0, in_feats) input node features, f32.
    params : list of (W_self, W_neigh, bias) per layer.
    Returns (n_dst_last, n_classes) f32.
    """
    n_layers = len(params)
    assert len(blocks) == n_layers

    # lane-padded feature dims at every layer boundary
    f_dims = [x.shape[1]] + [p[0].shape[1] for p in params]
    fp = [_round_up(d, _LANES) for d in f_dims]

    x_p = _pad2(x.astype(jnp.float32), x.shape[0], fp[0])

    inputs = [x_p]
    in_specs = [pl.BlockSpec(x_p.shape, lambda i: (0, 0))]
    n_dst_list = []

    for l, (adj, (w_self, w_neigh, b)) in enumerate(zip(blocks, params)):
        n_dst, n_src = adj.shape
        f_in, f_out = w_self.shape
        fin_p, fout_p = fp[l], fp[l + 1]

        # [W_self ; W_neigh] stacked along K, zero-padded to lane-dense shapes.
        wcat = jnp.zeros((2 * fin_p, fout_p), jnp.float32)
        wcat = wcat.at[:f_in, :f_out].set(w_self)
        wcat = wcat.at[fin_p:fin_p + f_in, :f_out].set(w_neigh)
        b_p = _pad2(b.astype(jnp.float32), 1, fout_p)

        adj = adj.astype(jnp.float32)
        inputs += [adj, wcat, b_p]
        in_specs += [
            pl.BlockSpec(adj.shape, lambda i: (0, 0)),
            pl.BlockSpec(wcat.shape, lambda i: (0, 0)),
            pl.BlockSpec(b_p.shape, lambda i: (0, 0)),
        ]
        n_dst_list.append(n_dst)

    out_rows = n_dst_list[-1]
    out_cols = fp[-1]
    n_classes = params[-1][0].shape[1]

    kernel = functools.partial(_fused_graphsage_kernel,
                               n_dst_list=tuple(n_dst_list))

    out_p = pl.pallas_call(
        kernel,
        out_shape=jax.ShapeDtypeStruct((out_rows, out_cols), jnp.float32),
        grid=(1,),
        in_specs=in_specs,
        out_specs=pl.BlockSpec((out_rows, out_cols), lambda i: (0, 0)),
        compiler_params=pltpu.CompilerParams(
            dimension_semantics=("arbitrary",)),
    )(*inputs)

    return out_p[:, :n_classes]


def init_params(key, in_feats, n_hidden, n_classes, n_layers):
    dims = [in_feats] + [n_hidden] * (n_layers - 1) + [n_classes]
    params = []
    for l in range(n_layers):
        f_in, f_out = dims[l], dims[l + 1]
        key, k1, k2, k3 = jax.random.split(key, 4)
        scale = 1.0 / jnp.sqrt(jnp.float32(f_in))
        w_self = jax.random.uniform(k1, (f_in, f_out), jnp.float32, -scale, scale)
        w_neigh = jax.random.uniform(k2, (f_in, f_out), jnp.float32, -scale, scale)
        bias = jax.random.uniform(k3, (1, f_out), jnp.float32, -scale, scale)
        params.append((w_self, w_neigh, bias))
    return params


def make_blocks(key, node_counts):
    """Row-normalized bipartite block adjacencies. node_counts[l] = #src nodes
    of layer l; node_counts[l+1] = #dst nodes (first n_dst src nodes)."""
    blocks = []
    for l in range(len(node_counts) - 1):
        n_src, n_dst = node_counts[l], node_counts[l + 1]
        key, k = jax.random.split(key)
        a = (jax.random.uniform(k, (n_dst, n_src)) < 0.3).astype(jnp.float32)
        a = a.at[jnp.arange(n_dst), jnp.arange(n_dst)].set(1.0)  # guarantee degree>=1
        deg = jnp.sum(a, axis=1, keepdims=True)
        blocks.append(a / deg)
    return blocks


if __name__ == "__main__":
    in_feats, n_hidden, n_classes, n_layers = 32, 32, 16, 3
    # nodes per hop (outermost neighborhood -> final mini-batch of dst nodes)
    node_counts = [64, 32, 16, 8]

    key = jax.random.PRNGKey(0)
    kx, kb, kp = jax.random.split(key, 3)

    x = jax.random.normal(kx, (node_counts[0], in_feats), jnp.float32)
    blocks = make_blocks(kb, node_counts)
    params = init_params(kp, in_feats, n_hidden, n_classes, n_layers)

    out = graphsage_forward(blocks, x, params)
    out = jax.block_until_ready(out)
    assert out.shape == (node_counts[-1], n_classes), out.shape

    # pure-JAX reference check (full f32 precision)
    h = x
    for l, (adj, (ws, wn, b)) in enumerate(zip(blocks, params)):
        n_dst = adj.shape[0]
        hi = jnp.dot(h[:n_dst], ws, precision=jax.lax.Precision.HIGHEST)
        hn = jnp.dot(jnp.dot(adj, h, precision=jax.lax.Precision.HIGHEST), wn,
                     precision=jax.lax.Precision.HIGHEST)
        ref = hi + hn + b
        if l != n_layers - 1:
            ref = jnp.maximum(ref, 0.0)
        h = ref

    assert jnp.allclose(out, h, atol=1e-3, rtol=1e-3), float(
        jnp.max(jnp.abs(out - h)))

    print("KERNEL_OK")
</pallas_src>

<mosaic_0001>
module attributes {stable_mosaic.version = 11 : i64} {
  func.func @_fused_graphsage_kernel(%arg0: i32, %arg1: memref<64x128xf32, #tpu.memory_space<vmem>>, %arg2: memref<32x64xf32, #tpu.memory_space<vmem>>, %arg3: memref<256x128xf32, #tpu.memory_space<vmem>>, %arg4: memref<1x128xf32, #tpu.memory_space<vmem>>, %arg5: memref<16x32xf32, #tpu.memory_space<vmem>>, %arg6: memref<256x128xf32, #tpu.memory_space<vmem>>, %arg7: memref<1x128xf32, #tpu.memory_space<vmem>>, %arg8: memref<8x16xf32, #tpu.memory_space<vmem>>, %arg9: memref<256x128xf32, #tpu.memory_space<vmem>>, %arg10: memref<1x128xf32, #tpu.memory_space<vmem>>, %arg11: memref<8x128xf32, #tpu.memory_space<vmem>>) attributes {dimension_semantics = [#tpu.dimension_semantics<arbitrary>], iteration_bounds = array<i64: 1>, scalar_prefetch = 0 : i64, scratch_operands = 0 : i64, tpu.core_type = #tpu.core_type<tc>, window_params = [{pipeline_mode = #tpu.pipeline_mode<synchronous>, transform_indices = @transform_0, window_bounds = array<i64: 64, 128>}, {pipeline_mode = #tpu.pipeline_mode<synchronous>, transform_indices = @transform_1, window_bounds = array<i64: 32, 64>}, {pipeline_mode = #tpu.pipeline_mode<synchronous>, transform_indices = @transform_2, window_bounds = array<i64: 256, 128>}, {pipeline_mode = #tpu.pipeline_mode<synchronous>, transform_indices = @transform_3, window_bounds = array<i64: 1, 128>}, {pipeline_mode = #tpu.pipeline_mode<synchronous>, transform_indices = @transform_4, window_bounds = array<i64: 16, 32>}, {pipeline_mode = #tpu.pipeline_mode<synchronous>, transform_indices = @transform_5, window_bounds = array<i64: 256, 128>}, {pipeline_mode = #tpu.pipeline_mode<synchronous>, transform_indices = @transform_6, window_bounds = array<i64: 1, 128>}, {pipeline_mode = #tpu.pipeline_mode<synchronous>, transform_indices = @transform_7, window_bounds = array<i64: 8, 16>}, {pipeline_mode = #tpu.pipeline_mode<synchronous>, transform_indices = @transform_8, window_bounds = array<i64: 256, 128>}, {pipeline_mode = #tpu.pipeline_mode<synchronous>, transform_indices = @transform_9, window_bounds = array<i64: 1, 128>}, {pipeline_mode = #tpu.pipeline_mode<synchronous>, transform_indices = @transform_10, window_bounds = array<i64: 8, 128>}]} {
    %c0 = arith.constant 0 : index
    %c0_0 = arith.constant 0 : index
    %0 = vector.load %arg1[%c0, %c0_0] : memref<64x128xf32, #tpu.memory_space<vmem>>, vector<64x128xf32>
    %c0_1 = arith.constant 0 : index
    %c0_2 = arith.constant 0 : index
    %1 = vector.load %arg2[%c0_1, %c0_2] : memref<32x64xf32, #tpu.memory_space<vmem>>, vector<32x64xf32>
    %cst = arith.constant dense<0.000000e+00> : vector<32x128xf32>
    %2 = tpu.matmul %1, %0, %cst {dimension_numbers = #tpu.dot_dimension_numbers<[1], [0], [0], [1], [0, 0, 1, 1], [], []>} : vector<32x64xf32>, vector<64x128xf32>, vector<32x128xf32> -> vector<32x128xf32>
    %3 = vector.extract_strided_slice %0 {offsets = [0, 0], sizes = [32, 128], strides = [1, 1]} : vector<64x128xf32> to vector<32x128xf32>
    %4 = tpu.concatenate %3, %2 in 1 : vector<32x128xf32>, vector<32x128xf32> -> vector<32x256xf32>
    %c0_3 = arith.constant 0 : index
    %c0_4 = arith.constant 0 : index
    %5 = vector.load %arg3[%c0_3, %c0_4] : memref<256x128xf32, #tpu.memory_space<vmem>>, vector<256x128xf32>
    %cst_5 = arith.constant dense<0.000000e+00> : vector<32x128xf32>
    %6 = tpu.matmul %4, %5, %cst_5 {dimension_numbers = #tpu.dot_dimension_numbers<[1], [0], [0], [1], [0, 0, 1, 1], [], []>} : vector<32x256xf32>, vector<256x128xf32>, vector<32x128xf32> -> vector<32x128xf32>
    %c0_6 = arith.constant 0 : index
    %c0_7 = arith.constant 0 : index
    %7 = vector.load %arg4[%c0_6, %c0_7] : memref<1x128xf32, #tpu.memory_space<vmem>>, vector<1x128xf32>
    %8 = vector.broadcast %7 : vector<1x128xf32> to vector<32x128xf32>
    %9 = arith.addf %6, %8 : vector<32x128xf32>
    %cst_8 = arith.constant 0.000000e+00 : f32
    %10 = vector.broadcast %cst_8 : f32 to vector<32x128xf32>
    %11 = arith.maximumf %9, %10 : vector<32x128xf32>
    %c0_9 = arith.constant 0 : index
    %c0_10 = arith.constant 0 : index
    %12 = vector.load %arg5[%c0_9, %c0_10] : memref<16x32xf32, #tpu.memory_space<vmem>>, vector<16x32xf32>
    %cst_11 = arith.constant dense<0.000000e+00> : vector<16x128xf32>
    %13 = tpu.matmul %12, %11, %cst_11 {dimension_numbers = #tpu.dot_dimension_numbers<[1], [0], [0], [1], [0, 0, 1, 1], [], []>} : vector<16x32xf32>, vector<32x128xf32>, vector<16x128xf32> -> vector<16x128xf32>
    %14 = vector.extract_strided_slice %11 {offsets = [0, 0], sizes = [16, 128], strides = [1, 1]} : vector<32x128xf32> to vector<16x128xf32>
    %15 = tpu.concatenate %14, %13 in 1 : vector<16x128xf32>, vector<16x128xf32> -> vector<16x256xf32>
    %c0_12 = arith.constant 0 : index
    %c0_13 = arith.constant 0 : index
    %16 = vector.load %arg6[%c0_12, %c0_13] : memref<256x128xf32, #tpu.memory_space<vmem>>, vector<256x128xf32>
    %cst_14 = arith.constant dense<0.000000e+00> : vector<16x128xf32>
    %17 = tpu.matmul %15, %16, %cst_14 {dimension_numbers = #tpu.dot_dimension_numbers<[1], [0], [0], [1], [0, 0, 1, 1], [], []>} : vector<16x256xf32>, vector<256x128xf32>, vector<16x128xf32> -> vector<16x128xf32>
    %c0_15 = arith.constant 0 : index
    %c0_16 = arith.constant 0 : index
    %18 = vector.load %arg7[%c0_15, %c0_16] : memref<1x128xf32, #tpu.memory_space<vmem>>, vector<1x128xf32>
    %19 = vector.broadcast %18 : vector<1x128xf32> to vector<16x128xf32>
    %20 = arith.addf %17, %19 : vector<16x128xf32>
    %cst_17 = arith.constant 0.000000e+00 : f32
    %21 = vector.broadcast %cst_17 : f32 to vector<16x128xf32>
    %22 = arith.maximumf %20, %21 : vector<16x128xf32>
    %c0_18 = arith.constant 0 : index
    %c0_19 = arith.constant 0 : index
    %23 = vector.load %arg8[%c0_18, %c0_19] : memref<8x16xf32, #tpu.memory_space<vmem>>, vector<8x16xf32>
    %cst_20 = arith.constant dense<0.000000e+00> : vector<8x128xf32>
    %24 = tpu.matmul %23, %22, %cst_20 {dimension_numbers = #tpu.dot_dimension_numbers<[1], [0], [0], [1], [0, 0, 1, 1], [], []>} : vector<8x16xf32>, vector<16x128xf32>, vector<8x128xf32> -> vector<8x128xf32>
    %25 = vector.extract_strided_slice %22 {offsets = [0, 0], sizes = [8, 128], strides = [1, 1]} : vector<16x128xf32> to vector<8x128xf32>
    %26 = tpu.concatenate %25, %24 in 1 : vector<8x128xf32>, vector<8x128xf32> -> vector<8x256xf32>
    %c0_21 = arith.constant 0 : index
    %c0_22 = arith.constant 0 : index
    %27 = vector.load %arg9[%c0_21, %c0_22] : memref<256x128xf32, #tpu.memory_space<vmem>>, vector<256x128xf32>
    %cst_23 = arith.constant dense<0.000000e+00> : vector<8x128xf32>
    %28 = tpu.matmul %26, %27, %cst_23 {dimension_numbers = #tpu.dot_dimension_numbers<[1], [0], [0], [1], [0, 0, 1, 1], [], []>} : vector<8x256xf32>, vector<256x128xf32>, vector<8x128xf32> -> vector<8x128xf32>
    %c0_24 = arith.constant 0 : index
    %c0_25 = arith.constant 0 : index
    %29 = vector.load %arg10[%c0_24, %c0_25] : memref<1x128xf32, #tpu.memory_space<vmem>>, vector<1x128xf32>
    %30 = vector.broadcast %29 : vector<1x128xf32> to vector<8x128xf32>
    %31 = arith.addf %28, %30 : vector<8x128xf32>
    %c0_26 = arith.constant 0 : index
    %c0_27 = arith.constant 0 : index
    %32 = vector.load %arg11[%c0_26, %c0_27] : memref<8x128xf32, #tpu.memory_space<vmem>>, vector<8x128xf32>
    tpu.vector_store %arg11[%c0_26, %c0_27], %31 {strides = array<i32>} : memref<8x128xf32, #tpu.memory_space<vmem>>, vector<8x128xf32>,
    return
  }
  func.func @transform_0(%arg0: i32) -> (i32, i32) {
    %c0_i32 = arith.constant 0 : i32
    %c0_i32_0 = arith.constant 0 : i32
    %c0_i32_1 = arith.constant 0 : i32
    return %c0_i32, %c0_i32_0 : i32, i32
  }
  func.func @transform_1(%arg0: i32) -> (i32, i32) {
    %c0_i32 = arith.constant 0 : i32
    %c0_i32_0 = arith.constant 0 : i32
    %c0_i32_1 = arith.constant 0 : i32
    return %c0_i32, %c0_i32_0 : i32, i32
  }
  func.func @transform_2(%arg0: i32) -> (i32, i32) {
    %c0_i32 = arith.constant 0 : i32
    %c0_i32_0 = arith.constant 0 : i32
    %c0_i32_1 = arith.constant 0 : i32
    return %c0_i32, %c0_i32_0 : i32, i32
  }
  func.func @transform_3(%arg0: i32) -> (i32, i32) {
    %c0_i32 = arith.constant 0 : i32
    %c0_i32_0 = arith.constant 0 : i32
    %c0_i32_1 = arith.constant 0 : i32
    return %c0_i32, %c0_i32_0 : i32, i32
  }
  func.func @transform_4(%arg0: i32) -> (i32, i32) {
    %c0_i32 = arith.constant 0 : i32
    %c0_i32_0 = arith.constant 0 : i32
    %c0_i32_1 = arith.constant 0 : i32
    return %c0_i32, %c0_i32_0 : i32, i32
  }
  func.func @transform_5(%arg0: i32) -> (i32, i32) {
    %c0_i32 = arith.constant 0 : i32
    %c0_i32_0 = arith.constant 0 : i32
    %c0_i32_1 = arith.constant 0 : i32
    return %c0_i32, %c0_i32_0 : i32, i32
  }
  func.func @transform_6(%arg0: i32) -> (i32, i32) {
    %c0_i32 = arith.constant 0 : i32
    %c0_i32_0 = arith.constant 0 : i32
    %c0_i32_1 = arith.constant 0 : i32
    return %c0_i32, %c0_i32_0 : i32, i32
  }
  func.func @transform_7(%arg0: i32) -> (i32, i32) {
    %c0_i32 = arith.constant 0 : i32
    %c0_i32_0 = arith.constant 0 : i32
    %c0_i32_1 = arith.constant 0 : i32
    return %c0_i32, %c0_i32_0 : i32, i32
  }
  func.func @transform_8(%arg0: i32) -> (i32, i32) {
    %c0_i32 = arith.constant 0 : i32
    %c0_i32_0 = arith.constant 0 : i32
    %c0_i32_1 = arith.constant 0 : i32
    return %c0_i32, %c0_i32_0 : i32, i32
  }
  func.func @transform_9(%arg0: i32) -> (i32, i32) {
    %c0_i32 = arith.constant 0 : i32
    %c0_i32_0 = arith.constant 0 : i32
    %c0_i32_1 = arith.constant 0 : i32
    return %c0_i32, %c0_i32_0 : i32, i32
  }
  func.func @transform_10(%arg0: i32) -> (i32, i32) {
    %c0_i32 = arith.constant 0 : i32
    %c0_i32_0 = arith.constant 0 : i32
    %c0_i32_1 = arith.constant 0 : i32
    return %c0_i32, %c0_i32_0 : i32, i32
  }
}

</mosaic_0001>

<llo_original>
// kernel: tpu_custom_call.1
$region0: #{tpu_custom_call.1}
  #allocation0 [shape = 'u32[]', space=smem, size = 0x4, offset = 0x4, fixed_abs, tag = 'smem constant byte address 0x4 - core index']
  #allocation1 [shape = 'u32[144,128]{1,0:T(1,128)}', space=vmem, size = 0x12000, scoped, tag = 'internal scratch']
  %s0 = inlined_call_operand.hbm [shape: f32[64,128], index: 0, kind: input, shape index: {}]
  %s1 = inlined_call_operand.hbm [shape: f32[32,64], index: 1, kind: input, shape index: {}]
  %s2 = inlined_call_operand.hbm [shape: f32[256,128], index: 2, kind: input, shape index: {}]
  %s3 = inlined_call_operand.vmem [shape: f32[1,128], index: 3, kind: input, shape index: {}]
  %s4 = inlined_call_operand.hbm [shape: f32[16,32], index: 4, kind: input, shape index: {}]
  %s5 = inlined_call_operand.hbm [shape: f32[256,128], index: 5, kind: input, shape index: {}]
  %s6 = inlined_call_operand.vmem [shape: f32[1,128], index: 6, kind: input, shape index: {}]
  %s7 = inlined_call_operand.vmem [shape: f32[8,16], index: 7, kind: input, shape index: {}]
  %s8 = inlined_call_operand.hbm [shape: f32[256,128], index: 8, kind: input, shape index: {}]
  %s9 = inlined_call_operand.vmem [shape: f32[1,128], index: 9, kind: input, shape index: {}]
  %s10 = inlined_call_operand.hbm [shape: f32[8,128], index: 10, kind: output, shape index: {}]
  %s11 = sld [smem:[#allocation0]]
  $region74: #{tpu_custom_call.1} parent=0
    _
  %s13 = ssub.s32 1, %s11
  %s14 = scalar_select 0, %s13, %s11
  $region1: #{tpu_custom_call.1} parent=0
    #allocation2 [shape = 'u8[32768]{0}', space=vmem, size = 0x8000, scoped, tag = 'input window, operand 0, single buffered']
    #allocation3 [shape = 's32[1]{0}', space=sflag, size = 0x4, scoped, tag = 'scoped memory for tpu_custom_call.1']
    #allocation4 [shape = 's32[1]{0}', space=sflag, size = 0x4, scoped, tag = 'scoped memory for tpu_custom_call.1']
    #allocation5 [shape = 'u8[16384]{0}', space=vmem, size = 0x4000, scoped, tag = 'input window, operand 1, single buffered']
    #allocation6 [shape = 's32[1]{0}', space=sflag, size = 0x4, scoped, tag = 'scoped memory for tpu_custom_call.1']
    #allocation7 [shape = 'u8[131072]{0}', space=vmem, size = 0x20000, scoped, tag = 'input window, operand 2, single buffered']
    #allocation8 [shape = 'u8[8192]{0}', space=vmem, size = 0x2000, scoped, tag = 'input window, operand 4, single buffered']
    #allocation9 [shape = 's32[1]{0}', space=sflag, size = 0x4, scoped, tag = 'scoped memory for tpu_custom_call.1']
    #allocation10 [shape = 'u8[131072]{0}', space=vmem, size = 0x20000, scoped, tag = 'input window, operand 5, single buffered']
    #allocation11 [shape = 'u8[131072]{0}', space=vmem, size = 0x20000, scoped, tag = 'input window, operand 8, single buffered']
    #allocation12 [shape = 's32[1]{0}', space=sflag, size = 0x4, scoped, tag = 'scoped memory for tpu_custom_call.1']
    #allocation13 [shape = 'u8[4096]{0}', space=vmem, size = 0x1000, scoped, tag = 'output window, operand 0, single buffered']
    %15 = vsyncpa [#allocation3], 0
    %16 = vsyncpa [#allocation6], 0
    %17 = vsyncpa [#allocation9], 0
    %18 = vsyncpa [#allocation12], 0
    %19 = vsyncpa [#allocation4], 0
    // Predicated region
    $region2: #{tpu_custom_call.1} parent=1 // pred_check
      _
    $region3: #{tpu_custom_call.1} parent=1 // pred_check_branch
      %21 = sbr.rel (0) target = $region5
    $region4: #{tpu_custom_call.1} parent=1 // pred_region
      %s23 = ssub.s32 1024, 1024
      %24 = vsyncadd [#allocation3], %s23
      %s25 = sshll.u32 [#allocation2], 4
      %s26 = int_to_ptr.vmem [resolvable:$true] %s25
      %31 = dma.hbm_to_vmem [thread:$0]  %s0, 1024, %s26, [#allocation3], 128, 128, 8
    $region5: #{tpu_custom_call.1} parent=1 // pred_fallthru
      _
    // Predicated region
    $region6: #{tpu_custom_call.1} parent=1 // pred_check
      _
    $region7: #{tpu_custom_call.1} parent=1 // pred_check_branch
      %33 = sbr.rel (0) target = $region9
    $region8: #{tpu_custom_call.1} parent=1 // pred_region
      %s35 = ssub.s32 512, 512
      %36 = vsyncadd [#allocation6], %s35
      %s37 = sshll.u32 [#allocation5], 4
      %s38 = int_to_ptr.vmem [resolvable:$true] %s37
      %43 = dma.hbm_to_vmem [thread:$0]  %s1, 512, %s38, [#allocation6], 128, 128, 8
    $region9: #{tpu_custom_call.1} parent=1 // pred_fallthru
      _
    // Predicated region
    $region10: #{tpu_custom_call.1} parent=1 // pred_check
      _
    $region11: #{tpu_custom_call.1} parent=1 // pred_check_branch
      %45 = sbr.rel (0) target = $region13
    $region12: #{tpu_custom_call.1} parent=1 // pred_region
      %s47 = ssub.s32 4096, 4096
      %48 = vsyncadd [#allocation6], %s47
      %s49 = sshll.u32 [#allocation7], 4
      %s50 = int_to_ptr.vmem [resolvable:$true] %s49
      %55 = dma.hbm_to_vmem [thread:$0]  %s2, 4096, %s50, [#allocation6], 128, 128, 8
    $region13: #{tpu_custom_call.1} parent=1 // pred_fallthru
      _
    // Predicated region
    $region14: #{tpu_custom_call.1} parent=1 // pred_check
      _
    $region15: #{tpu_custom_call.1} parent=1 // pred_check_branch
      %57 = sbr.rel (0) target = $region17
    $region16: #{tpu_custom_call.1} parent=1 // pred_region
      _
    $region17: #{tpu_custom_call.1} parent=1 // pred_fallthru
      _
    // Predicated region
    $region18: #{tpu_custom_call.1} parent=1 // pred_check
      _
    $region19: #{tpu_custom_call.1} parent=1 // pred_check_branch
      %59 = sbr.rel (0) target = $region21
    $region20: #{tpu_custom_call.1} parent=1 // pred_region
      %s61 = ssub.s32 256, 256
      %62 = vsyncadd [#allocation9], %s61
      %s63 = sshll.u32 [#allocation8], 4
      %s64 = int_to_ptr.vmem [resolvable:$true] %s63
      %69 = dma.hbm_to_vmem [thread:$0]  %s4, 256, %s64, [#allocation9], 128, 128, 8
    $region21: #{tpu_custom_call.1} parent=1 // pred_fallthru
      _
    // Predicated region
    $region22: #{tpu_custom_call.1} parent=1 // pred_check
      _
    $region23: #{tpu_custom_call.1} parent=1 // pred_check_branch
      %71 = sbr.rel (0) target = $region25
    $region24: #{tpu_custom_call.1} parent=1 // pred_region
      %s73 = ssub.s32 4096, 4096
      %74 = vsyncadd [#allocation9], %s73
      %s75 = sshll.u32 [#allocation10], 4
      %s76 = int_to_ptr.vmem [resolvable:$true] %s75
      %81 = dma.hbm_to_vmem [thread:$0]  %s5, 4096, %s76, [#allocation9], 128, 128, 8
    $region25: #{tpu_custom_call.1} parent=1 // pred_fallthru
      _
    // Predicated region
    $region26: #{tpu_custom_call.1} parent=1 // pred_check
      _
    $region27: #{tpu_custom_call.1} parent=1 // pred_check_branch
      %83 = sbr.rel (0) target = $region29
    $region28: #{tpu_custom_call.1} parent=1 // pred_region
      _
    $region29: #{tpu_custom_call.1} parent=1 // pred_fallthru
      _
    // Predicated region
    $region30: #{tpu_custom_call.1} parent=1 // pred_check
      _
    $region31: #{tpu_custom_call.1} parent=1 // pred_check_branch
      %85 = sbr.rel (0) target = $region33
    $region32: #{tpu_custom_call.1} parent=1 // pred_region
      _
    $region33: #{tpu_custom_call.1} parent=1 // pred_fallthru
      _
    // Predicated region
    $region34: #{tpu_custom_call.1} parent=1 // pred_check
      _
    $region35: #{tpu_custom_call.1} parent=1 // pred_check_branch
      %87 = sbr.rel (0) target = $region37
    $region36: #{tpu_custom_call.1} parent=1 // pred_region
      %s89 = ssub.s32 4096, 4096
      %90 = vsyncadd [#allocation12], %s89
      %s91 = sshll.u32 [#allocation11], 4
      %s92 = int_to_ptr.vmem [resolvable:$true] %s91
      %97 = dma.hbm_to_vmem [thread:$0]  %s8, 4096, %s92, [#allocation12], 128, 128, 8
    $region37: #{tpu_custom_call.1} parent=1 // pred_fallthru
      _
    // Predicated region
    $region38: #{tpu_custom_call.1} parent=1 // pred_check
      _
    $region39: #{tpu_custom_call.1} parent=1 // pred_check_branch
      %99 = sbr.rel (0) target = $region41
    $region40: #{tpu_custom_call.1} parent=1 // pred_region
      _
    $region41: #{tpu_custom_call.1} parent=1 // pred_fallthru
      _
    // Predicated region
    $region42: #{tpu_custom_call.1} parent=1 // pred_check
      _
    $region43: #{tpu_custom_call.1} parent=1 // pred_check_branch
      %101 = sbr.rel (0) target = $region45
    $region44: #{tpu_custom_call.1} parent=1 // pred_region
      %102 = dma.done [#allocation3], 1024
    $region45: #{tpu_custom_call.1} parent=1 // pred_fallthru
      _
    // Predicated region
    $region46: #{tpu_custom_call.1} parent=1 // pred_check
      _
    $region47: #{tpu_custom_call.1} parent=1 // pred_check_branch
      %104 = sbr.rel (0) target = $region49
    $region48: #{tpu_custom_call.1} parent=1 // pred_region
      %105 = dma.done [#allocation6], 512
    $region49: #{tpu_custom_call.1} parent=1 // pred_fallthru
      _
    // Predicated region
    $region50: #{tpu_custom_call.1} parent=1 // pred_check
      _
    $region51: #{tpu_custom_call.1} parent=1 // pred_check_branch
      %107 = sbr.rel (0) target = $region53
    $region52: #{tpu_custom_call.1} parent=1 // pred_region
      %108 = dma.done [#allocation6], 4096
    $region53: #{tpu_custom_call.1} parent=1 // pred_fallthru
      _
    // Predicated region
    $region54: #{tpu_custom_call.1} parent=1 // pred_check
      _
    $region55: #{tpu_custom_call.1} parent=1 // pred_check_branch
      %110 = sbr.rel (0) target = $region57
    $region56: #{tpu_custom_call.1} parent=1 // pred_region
      %111 = dma.done [#allocation9], 256
    $region57: #{tpu_custom_call.1} parent=1 // pred_fallthru
      _
    // Predicated region
    $region58: #{tpu_custom_call.1} parent=1 // pred_check
      _
    $region59: #{tpu_custom_call.1} parent=1 // pred_check_branch
      %113 = sbr.rel (0) target = $region61
    $region60: #{tpu_custom_call.1} parent=1 // pred_region
      %114 = dma.done [#allocation9], 4096
    $region61: #{tpu_custom_call.1} parent=1 // pred_fallthru
      _
    // Predicated region
    $region62: #{tpu_custom_call.1} parent=1 // pred_check
      _
    $region63: #{tpu_custom_call.1} parent=1 // pred_check_branch
      %116 = sbr.rel (0) target = $region65
    $region64: #{tpu_custom_call.1} parent=1 // pred_region
      %117 = dma.done [#allocation12], 4096
    $region65: #{tpu_custom_call.1} parent=1 // pred_fallthru
      _
    %v118 = vld [vmem:[#allocation2] sm:$0xff]
    %v119 = vld [vmem:[#allocation2 + $0x8] sm:$0xff]
    %v120 = vld [vmem:[#allocation2 + $0x10] sm:$0xff]
    %v121 = vld [vmem:[#allocation2 + $0x18] sm:$0xff]
    %v122 = vld [vmem:[#allocation2 + $0x20] sm:$0xff]
    %v123 = vld [vmem:[#allocation2 + $0x28] sm:$0xff]
    %v124 = vld [vmem:[#allocation2 + $0x30] sm:$0xff]
    %v125 = vld [vmem:[#allocation2 + $0x38] sm:$0xff]
    %v126 = vld [vmem:[#allocation5] sm:$0xff]
    %v127 = vld [vmem:[#allocation5 + $0x8] sm:$0xff]
    %v128 = vld [vmem:[#allocation5 + $0x10] sm:$0xff]
    %v129 = vld [vmem:[#allocation5 + $0x18] sm:$0xff]
    %vm130 = vcmask 523264
    %v132 = vsel %vm130, %v126, 0
    %v135 = vsel %vm130, %v127, 0
    %v138 = vsel %vm130, %v128, 0
    %v141 = vsel %vm130, %v129, 0
    %143 = vmatprep.subr.mxu0 0.0
    %144 = vmatpush1.msra.mxu0 %v118
    %145 = vmatprep.subr.mxu0 0.0
    %146 = vmatpush1.msra.mxu0 %v119
    %147 = vmatprep.subr.mxu0 0.0
    %148 = vmatpush1.msra.mxu0 %v120
    %149 = vmatprep.subr.mxu0 0.0
    %150 = vmatpush1.msra.mxu0 %v121
    %151 = vmatprep.subr.mxu0 0.0
    %152 = vmatpush1.msra.mxu0 %v122
    %153 = vmatprep.subr.mxu0 0.0
    %154 = vmatpush1.msra.mxu0 %v123
    %155 = vmatprep.subr.mxu0 0.0
    %156 = vmatpush1.msra.mxu0 %v124
    %157 = vmatprep.subr.mxu0 0.0
    %158 = vmatpush1.msra.mxu0 %v125
    %159 = vmatprep.subr.mxu0 0.0
    %160 = vmatpush1.msra.mxu0 0.0
    %161 = vmatprep.subr.mxu0 0.0
    %162 = vmatpush1.msra.mxu0 0.0
    %163 = vmatprep.subr.mxu0 0.0
    %164 = vmatpush1.msra.mxu0 0.0
    %165 = vmatprep.subr.mxu0 0.0
    %166 = vmatpush1.msra.mxu0 0.0
    %167 = vmatprep.subr.mxu0 0.0
    %168 = vmatpush1.msra.mxu0 0.0
    %169 = vmatprep.subr.mxu0 0.0
    %170 = vmatpush1.msra.mxu0 0.0
    %171 = vmatprep.subr.mxu0 0.0
    %172 = vmatpush1.msra.mxu0 0.0
    %173 = vmatprep.subr.mxu0 0.0
    %174 = vmatpush1.msra.mxu0 0.0
    %175 = vmatprep.subr.mxu0 0.0
    %176 = vmatpush1.msra.mxu0 0.0
    %177 = vmatprep.subr.mxu0 0.0
    %178 = vmatpush1.msra.mxu0 0.0
    %179 = vmatprep.subr.mxu0 0.0
    %180 = vmatpush1.msra.mxu0 0.0
    %181 = vmatprep.subr.mxu0 0.0
    %182 = vmatpush1.msra.mxu0 0.0
    %183 = vmatprep.subr.mxu0 0.0
    %184 = vmatpush1.msra.mxu0 0.0
    %185 = vmatprep.subr.mxu0 0.0
    %186 = vmatpush1.msra.mxu0 0.0
    %187 = vmatprep.subr.mxu0 0.0
    %188 = vmatpush1.msra.mxu0 0.0
    %189 = vmatprep.subr.mxu0 0.0
    %190 = vmatpush1.msra.mxu0 0.0
    %191 = vmatprep.subr.mxu0 0.0
    %192 = vmatpush1.msra.mxu0 0.0
    %193 = vmatprep.subr.mxu0 0.0
    %194 = vmatpush1.msra.mxu0 0.0
    %195 = vmatprep.subr.mxu0 0.0
    %196 = vmatpush1.msra.mxu0 0.0
    %197 = vmatprep.subr.mxu0 0.0
    %198 = vmatpush1.msra.mxu0 0.0
    %199 = vmatprep.subr.mxu0 0.0
    %200 = vmatpush1.msra.mxu0 0.0
    %201 = vmatprep.subr.mxu0 0.0
    %202 = vmatpush1.msra.mxu0 0.0
    %203 = vmatprep.subr.mxu0 0.0
    %204 = vmatpush1.msra.mxu0 0.0
    %205 = vmatprep.subr.mxu0 0.0
    %206 = vmatpush1.msra.mxu0 0.0
    %207 = vmatprep.mubr.f32.mxu0 0.0
    %208 = vmatmul.mubr.f32.gmra.mrb[0].mxu0 %v132
    %v209 = vpop.f32.mrb[0].mxu0
    %v210 = vadd.f32 0.0, %v209
    %v211 = vpop.f32.mrb[0].mxu0
    %212 = vmatprep.mubr.f32.mxu0 0.0
    %213 = vmatmul.mubr.f32.gmra.mrb[0].mxu0 %v135
    %v214 = vpop.f32.mrb[0].mxu0
    %v215 = vadd.f32 0.0, %v214
    %v216 = vpop.f32.mrb[0].mxu0
    %217 = vmatprep.mubr.f32.mxu0 0.0
    %218 = vmatmul.mubr.f32.gmra.mrb[0].mxu0 %v138
    %v219 = vpop.f32.mrb[0].mxu0
    %v220 = vadd.f32 0.0, %v219
    %v221 = vpop.f32.mrb[0].mxu0
    %222 = vmatprep.mubr.f32.mxu0 0.0
    %223 = vmatmul.mubr.f32.gmra.mrb[0].mxu0 %v141
    %v224 = vpop.f32.mrb[0].mxu0
    %v225 = vadd.f32 0.0, %v224
    %v226 = vpop.f32.mrb[0].mxu0
    %227 = vdwg.mxu0
    %v228 = vld [vmem:[#allocation7] sm:$0xff]
    %v229 = vld [vmem:[#allocation7 + $0x8] sm:$0xff]
    %v230 = vld [vmem:[#allocation7 + $0x10] sm:$0xff]
    %v231 = vld [vmem:[#allocation7 + $0x18] sm:$0xff]
    %v232 = vld [vmem:[#allocation7 + $0x20] sm:$0xff]
    %v233 = vld [vmem:[#allocation7 + $0x28] sm:$0xff]
    %v234 = vld [vmem:[#allocation7 + $0x30] sm:$0xff]
    %v235 = vld [vmem:[#allocation7 + $0x38] sm:$0xff]
    %v236 = vld [vmem:[#allocation7 + $0x40] sm:$0xff]
    %v237 = vld [vmem:[#allocation7 + $0x48] sm:$0xff]
    %v238 = vld [vmem:[#allocation7 + $0x50] sm:$0xff]
    %v239 = vld [vmem:[#allocation7 + $0x58] sm:$0xff]
    %v240 = vld [vmem:[#allocation7 + $0x60] sm:$0xff]
    %v241 = vld [vmem:[#allocation7 + $0x68] sm:$0xff]
    %v242 = vld [vmem:[#allocation7 + $0x70] sm:$0xff]
    %v243 = vld [vmem:[#allocation7 + $0x78] sm:$0xff]
    %v244 = vld [vmem:[#allocation7 + $0x80] sm:$0xff]
    %v245 = vld [vmem:[#allocation7 + $0x88] sm:$0xff]
    %v246 = vld [vmem:[#allocation7 + $0x90] sm:$0xff]
    %v247 = vld [vmem:[#allocation7 + $0x98] sm:$0xff]
    %v248 = vld [vmem:[#allocation7 + $0xa0] sm:$0xff]
    %v249 = vld [vmem:[#allocation7 + $0xa8] sm:$0xff]
    %v250 = vld [vmem:[#allocation7 + $0xb0] sm:$0xff]
    %v251 = vld [vmem:[#allocation7 + $0xb8] sm:$0xff]
    %v252 = vld [vmem:[#allocation7 + $0xc0] sm:$0xff]
    %v253 = vld [vmem:[#allocation7 + $0xc8] sm:$0xff]
    %v254 = vld [vmem:[#allocation7 + $0xd0] sm:$0xff]
    %v255 = vld [vmem:[#allocation7 + $0xd8] sm:$0xff]
    %v256 = vld [vmem:[#allocation7 + $0xe0] sm:$0xff]
    %v257 = vld [vmem:[#allocation7 + $0xe8] sm:$0xff]
    %v258 = vld [vmem:[#allocation7 + $0xf0] sm:$0xff]
    %v259 = vld [vmem:[#allocation7 + $0xf8] sm:$0xff]
    %v260 = vld [vmem:[%s3] sm:$0x1]
    %v262 = vlaneseq
    %v263 = vshrl.u32 %v262, 7
    %v264 = vsub.s32 0, %v263
    %v265 = vrot.slane %v260, %v264
    %267 = vmatprep.subr.mxu0 0.0
    %268 = vmatpush1.msra.mxu0 %v228
    %269 = vmatprep.subr.mxu0 0.0
    %270 = vmatpush1.msra.mxu0 %v229
    %271 = vmatprep.subr.mxu0 0.0
    %272 = vmatpush1.msra.mxu0 %v230
    %273 = vmatprep.subr.mxu0 0.0
    %274 = vmatpush1.msra.mxu0 %v231
    %275 = vmatprep.subr.mxu0 0.0
    %276 = vmatpush1.msra.mxu0 %v232
    %277 = vmatprep.subr.mxu0 0.0
    %278 = vmatpush1.msra.mxu0 %v233
    %279 = vmatprep.subr.mxu0 0.0
    %280 = vmatpush1.msra.mxu0 %v234
    %281 = vmatprep.subr.mxu0 0.0
    %282 = vmatpush1.msra.mxu0 %v235
    %283 = vmatprep.subr.mxu0 0.0
    %284 = vmatpush1.msra.mxu0 %v236
    %285 = vmatprep.subr.mxu0 0.0
    %286 = vmatpush1.msra.mxu0 %v237
    %287 = vmatprep.subr.mxu0 0.0
    %288 = vmatpush1.msra.mxu0 %v238
    %289 = vmatprep.subr.mxu0 0.0
    %290 = vmatpush1.msra.mxu0 %v239
    %291 = vmatprep.subr.mxu0 0.0
    %292 = vmatpush1.msra.mxu0 %v240
    %293 = vmatprep.subr.mxu0 0.0
    %294 = vmatpush1.msra.mxu0 %v241
    %295 = vmatprep.subr.mxu0 0.0
    %296 = vmatpush1.msra.mxu0 %v242
    %297 = vmatprep.subr.mxu0 0.0
    %298 = vmatpush1.msra.mxu0 %v243
    %299 = vmatprep.subr.mxu0 0.0
    %300 = vmatpush1.msra.mxu0 %v244
    %301 = vmatprep.subr.mxu0 0.0
    %302 = vmatpush1.msra.mxu0 %v245
    %303 = vmatprep.subr.mxu0 0.0
    %304 = vmatpush1.msra.mxu0 %v246
    %305 = vmatprep.subr.mxu0 0.0
    %306 = vmatpush1.msra.mxu0 %v247
    %307 = vmatprep.subr.mxu0 0.0
    %308 = vmatpush1.msra.mxu0 %v248
    %309 = vmatprep.subr.mxu0 0.0
    %310 = vmatpush1.msra.mxu0 %v249
    %311 = vmatprep.subr.mxu0 0.0
    %312 = vmatpush1.msra.mxu0 %v250
    %313 = vmatprep.subr.mxu0 0.0
    %314 = vmatpush1.msra.mxu0 %v251
    %315 = vmatprep.subr.mxu0 0.0
    %316 = vmatpush1.msra.mxu0 %v252
    %317 = vmatprep.subr.mxu0 0.0
    %318 = vmatpush1.msra.mxu0 %v253
    %319 = vmatprep.subr.mxu0 0.0
    %320 = vmatpush1.msra.mxu0 %v254
    %321 = vmatprep.subr.mxu0 0.0
    %322 = vmatpush1.msra.mxu0 %v255
    %323 = vmatprep.subr.mxu0 0.0
    %324 = vmatpush1.msra.mxu0 %v256
    %325 = vmatprep.subr.mxu0 0.0
    %326 = vmatpush1.msra.mxu0 %v257
    %327 = vmatprep.subr.mxu0 0.0
    %328 = vmatpush1.msra.mxu0 %v258
    %329 = vmatprep.subr.mxu0 0.0
    %330 = vmatpush1.msra.mxu0 %v259
    %331 = vmatprep.mubr.f32.mxu0 %v210
    %332 = vmatmul.mubr.f32.gmra.mrb[0].mxu0 %v118
    %v333 = vpop.f32.mrb[0].mxu0
    %v334 = vadd.f32 %v265, %v333
    %v335 = vpop.f32.mrb[0].mxu0
    %336 = vmatprep.mubr.f32.mxu0 %v215
    %337 = vmatmul.mubr.f32.gmra.mrb[0].mxu0 %v119
    %v338 = vpop.f32.mrb[0].mxu0
    %v339 = vadd.f32 %v265, %v338
    %v340 = vpop.f32.mrb[0].mxu0
    %341 = vmatprep.mubr.f32.mxu0 %v220
    %342 = vmatmul.mubr.f32.gmra.mrb[0].mxu0 %v120
    %v343 = vpop.f32.mrb[0].mxu0
    %v344 = vadd.f32 %v265, %v343
    %v345 = vpop.f32.mrb[0].mxu0
    %346 = vmatprep.mubr.f32.mxu0 %v225
    %347 = vmatmul.mubr.f32.gmra.mrb[0].mxu0 %v121
    %v348 = vpop.f32.mrb[0].mxu0
    %v349 = vadd.f32 %v265, %v348
    %v350 = vpop.f32.mrb[0].mxu0
    %351 = vdwg.mxu0
    %v352 = vmax.f32 %v334, 0.0
    %v353 = vmax.f32 %v339, 0.0
    %v354 = vmax.f32 %v344, 0.0
    %v355 = vmax.f32 %v349, 0.0
    %v356 = vld [vmem:[#allocation8] sm:$0xff]
    %v357 = vld [vmem:[#allocation8 + $0x8] sm:$0xff]
    %vm358 = vcmask 261120
    %v360 = vsel %vm358, %v356, 0
    %v363 = vsel %vm358, %v357, 0
    %365 = vmatprep.subr.mxu0 0.0
    %366 = vmatpush1.msra.mxu0 %v352
    %367 = vmatprep.subr.mxu0 0.0
    %368 = vmatpush1.msra.mxu0 %v353
    %369 = vmatprep.subr.mxu0 0.0
    %370 = vmatpush1.msra.mxu0 %v354
    %371 = vmatprep.subr.mxu0 0.0
    %372 = vmatpush1.msra.mxu0 %v355
    %373 = vmatprep.subr.mxu0 0.0
    %374 = vmatpush1.msra.mxu0 0.0
    %375 = vmatprep.subr.mxu0 0.0
    %376 = vmatpush1.msra.mxu0 0.0
    %377 = vmatprep.subr.mxu0 0.0
    %378 = vmatpush1.msra.mxu0 0.0
    %379 = vmatprep.subr.mxu0 0.0
    %380 = vmatpush1.msra.mxu0 0.0
    %381 = vmatprep.subr.mxu0 0.0
    %382 = vmatpush1.msra.mxu0 0.0
    %383 = vmatprep.subr.mxu0 0.0
    %384 = vmatpush1.msra.mxu0 0.0
    %385 = vmatprep.subr.mxu0 0.0
    %386 = vmatpush1.msra.mxu0 0.0
    %387 = vmatprep.subr.mxu0 0.0
    %388 = vmatpush1.msra.mxu0 0.0
    %389 = vmatprep.subr.mxu0 0.0
    %390 = vmatpush1.msra.mxu0 0.0
    %391 = vmatprep.subr.mxu0 0.0
    %392 = vmatpush1.msra.mxu0 0.0
    %393 = vmatprep.subr.mxu0 0.0
    %394 = vmatpush1.msra.mxu0 0.0
    %395 = vmatprep.subr.mxu0 0.0
    %396 = vmatpush1.msra.mxu0 0.0
    %397 = vmatprep.subr.mxu0 0.0
    %398 = vmatpush1.msra.mxu0 0.0
    %399 = vmatprep.subr.mxu0 0.0
    %400 = vmatpush1.msra.mxu0 0.0
    %401 = vmatprep.subr.mxu0 0.0
    %402 = vmatpush1.msra.mxu0 0.0
    %403 = vmatprep.subr.mxu0 0.0
    %404 = vmatpush1.msra.mxu0 0.0
    %405 = vmatprep.subr.mxu0 0.0
    %406 = vmatpush1.msra.mxu0 0.0
    %407 = vmatprep.subr.mxu0 0.0
    %408 = vmatpush1.msra.mxu0 0.0
    %409 = vmatprep.subr.mxu0 0.0
    %410 = vmatpush1.msra.mxu0 0.0
    %411 = vmatprep.subr.mxu0 0.0
    %412 = vmatpush1.msra.mxu0 0.0
    %413 = vmatprep.subr.mxu0 0.0
    %414 = vmatpush1.msra.mxu0 0.0
    %415 = vmatprep.subr.mxu0 0.0
    %416 = vmatpush1.msra.mxu0 0.0
    %417 = vmatprep.subr.mxu0 0.0
    %418 = vmatpush1.msra.mxu0 0.0
    %419 = vmatprep.subr.mxu0 0.0
    %420 = vmatpush1.msra.mxu0 0.0
    %421 = vmatprep.subr.mxu0 0.0
    %422 = vmatpush1.msra.mxu0 0.0
    %423 = vmatprep.subr.mxu0 0.0
    %424 = vmatpush1.msra.mxu0 0.0
    %425 = vmatprep.subr.mxu0 0.0
    %426 = vmatpush1.msra.mxu0 0.0
    %427 = vmatprep.subr.mxu0 0.0
    %428 = vmatpush1.msra.mxu0 0.0
    %429 = vmatprep.mubr.f32.mxu0 0.0
    %430 = vmatmul.mubr.f32.gmra.mrb[0].mxu0 %v360
    %v431 = vpop.f32.mrb[0].mxu0
    %v432 = vadd.f32 0.0, %v431
    %v433 = vpop.f32.mrb[0].mxu0
    %434 = vmatprep.mubr.f32.mxu0 0.0
    %435 = vmatmul.mubr.f32.gmra.mrb[0].mxu0 %v363
    %v436 = vpop.f32.mrb[0].mxu0
    %v437 = vadd.f32 0.0, %v436
    %v438 = vpop.f32.mrb[0].mxu0
    %439 = vdwg.mxu0
    %v440 = vld [vmem:[#allocation10] sm:$0xff]
    %v441 = vld [vmem:[#allocation10 + $0x8] sm:$0xff]
    %v442 = vld [vmem:[#allocation10 + $0x10] sm:$0xff]
    %v443 = vld [vmem:[#allocation10 + $0x18] sm:$0xff]
    %v444 = vld [vmem:[#allocation10 + $0x20] sm:$0xff]
    %v445 = vld [vmem:[#allocation10 + $0x28] sm:$0xff]
    %v446 = vld [vmem:[#allocation10 + $0x30] sm:$0xff]
    %v447 = vld [vmem:[#allocation10 + $0x38] sm:$0xff]
    %v448 = vld [vmem:[#allocation10 + $0x40] sm:$0xff]
    %v449 = vld [vmem:[#allocation10 + $0x48] sm:$0xff]
    %v450 = vld [vmem:[#allocation10 + $0x50] sm:$0xff]
    %v451 = vld [vmem:[#allocation10 + $0x58] sm:$0xff]
    %v452 = vld [vmem:[#allocation10 + $0x60] sm:$0xff]
    %v453 = vld [vmem:[#allocation10 + $0x68] sm:$0xff]
    %v454 = vld [vmem:[#allocation10 + $0x70] sm:$0xff]
    %v455 = vld [vmem:[#allocation10 + $0x78] sm:$0xff]
    %v456 = vld [vmem:[#allocation10 + $0x80] sm:$0xff]
    %v457 = vld [vmem:[#allocation10 + $0x88] sm:$0xff]
    %v458 = vld [vmem:[#allocation10 + $0x90] sm:$0xff]
    %v459 = vld [vmem:[#allocation10 + $0x98] sm:$0xff]
    %v460 = vld [vmem:[#allocation10 + $0xa0] sm:$0xff]
    %v461 = vld [vmem:[#allocation10 + $0xa8] sm:$0xff]
    %v462 = vld [vmem:[#allocation10 + $0xb0] sm:$0xff]
    %v463 = vld [vmem:[#allocation10 + $0xb8] sm:$0xff]
    %v464 = vld [vmem:[#allocation10 + $0xc0] sm:$0xff]
    %v465 = vld [vmem:[#allocation10 + $0xc8] sm:$0xff]
    %v466 = vld [vmem:[#allocation10 + $0xd0] sm:$0xff]
    %v467 = vld [vmem:[#allocation10 + $0xd8] sm:$0xff]
    %v468 = vld [vmem:[#allocation10 + $0xe0] sm:$0xff]
    %v469 = vld [vmem:[#allocation10 + $0xe8] sm:$0xff]
    %v470 = vld [vmem:[#allocation10 + $0xf0] sm:$0xff]
    %v471 = vld [vmem:[#allocation10 + $0xf8] sm:$0xff]
    %v472 = vld [vmem:[%s6] sm:$0x1]
    %v474 = vlaneseq
    %v475 = vshrl.u32 %v474, 7
    %v476 = vsub.s32 0, %v475
    %v477 = vrot.slane %v472, %v476
    %479 = vmatprep.subr.mxu0 0.0
    %480 = vmatpush1.msra.mxu0 %v440
    %481 = vmatprep.subr.mxu0 0.0
    %482 = vmatpush1.msra.mxu0 %v441
    %483 = vmatprep.subr.mxu0 0.0
    %484 = vmatpush1.msra.mxu0 %v442
    %485 = vmatprep.subr.mxu0 0.0
    %486 = vmatpush1.msra.mxu0 %v443
    %487 = vmatprep.subr.mxu0 0.0
    %488 = vmatpush1.msra.mxu0 %v444
    %489 = vmatprep.subr.mxu0 0.0
    %490 = vmatpush1.msra.mxu0 %v445
    %491 = vmatprep.subr.mxu0 0.0
    %492 = vmatpush1.msra.mxu0 %v446
    %493 = vmatprep.subr.mxu0 0.0
    %494 = vmatpush1.msra.mxu0 %v447
    %495 = vmatprep.subr.mxu0 0.0
    %496 = vmatpush1.msra.mxu0 %v448
    %497 = vmatprep.subr.mxu0 0.0
    %498 = vmatpush1.msra.mxu0 %v449
    %499 = vmatprep.subr.mxu0 0.0
    %500 = vmatpush1.msra.mxu0 %v450
    %501 = vmatprep.subr.mxu0 0.0
    %502 = vmatpush1.msra.mxu0 %v451
    %503 = vmatprep.subr.mxu0 0.0
    %504 = vmatpush1.msra.mxu0 %v452
    %505 = vmatprep.subr.mxu0 0.0
    %506 = vmatpush1.msra.mxu0 %v453
    %507 = vmatprep.subr.mxu0 0.0
    %508 = vmatpush1.msra.mxu0 %v454
    %509 = vmatprep.subr.mxu0 0.0
    %510 = vmatpush1.msra.mxu0 %v455
    %511 = vmatprep.subr.mxu0 0.0
    %512 = vmatpush1.msra.mxu0 %v456
    %513 = vmatprep.subr.mxu0 0.0
    %514 = vmatpush1.msra.mxu0 %v457
    %515 = vmatprep.subr.mxu0 0.0
    %516 = vmatpush1.msra.mxu0 %v458
    %517 = vmatprep.subr.mxu0 0.0
    %518 = vmatpush1.msra.mxu0 %v459
    %519 = vmatprep.subr.mxu0 0.0
    %520 = vmatpush1.msra.mxu0 %v460
    %521 = vmatprep.subr.mxu0 0.0
    %522 = vmatpush1.msra.mxu0 %v461
    %523 = vmatprep.subr.mxu0 0.0
    %524 = vmatpush1.msra.mxu0 %v462
    %525 = vmatprep.subr.mxu0 0.0
    %526 = vmatpush1.msra.mxu0 %v463
    %527 = vmatprep.subr.mxu0 0.0
    %528 = vmatpush1.msra.mxu0 %v464
    %529 = vmatprep.subr.mxu0 0.0
    %530 = vmatpush1.msra.mxu0 %v465
    %531 = vmatprep.subr.mxu0 0.0
    %532 = vmatpush1.msra.mxu0 %v466
    %533 = vmatprep.subr.mxu0 0.0
    %534 = vmatpush1.msra.mxu0 %v467
    %535 = vmatprep.subr.mxu0 0.0
    %536 = vmatpush1.msra.mxu0 %v468
    %537 = vmatprep.subr.mxu0 0.0
    %538 = vmatpush1.msra.mxu0 %v469
    %539 = vmatprep.subr.mxu0 0.0
    %540 = vmatpush1.msra.mxu0 %v470
    %541 = vmatprep.subr.mxu0 0.0
    %542 = vmatpush1.msra.mxu0 %v471
    %543 = vmatprep.mubr.f32.mxu0 %v432
    %544 = vmatmul.mubr.f32.gmra.mrb[0].mxu0 %v352
    %v545 = vpop.f32.mrb[0].mxu0
    %v546 = vadd.f32 %v477, %v545
    %v547 = vpop.f32.mrb[0].mxu0
    %548 = vmatprep.mubr.f32.mxu0 %v437
    %549 = vmatmul.mubr.f32.gmra.mrb[0].mxu0 %v353
    %v550 = vpop.f32.mrb[0].mxu0
    %v551 = vadd.f32 %v477, %v550
    %v552 = vpop.f32.mrb[0].mxu0
    %553 = vdwg.mxu0
    %v554 = vmax.f32 %v546, 0.0
    %v555 = vmax.f32 %v551, 0.0
    %v556 = vld [vmem:[%s7] sm:$0xff]
    %vm557 = vcmask 130048
    %v559 = vsel %vm557, %v556, 0
    %561 = vmatprep.subr.mxu0 0.0
    %562 = vmatpush1.msra.mxu0 %v554
    %563 = vmatprep.subr.mxu0 0.0
    %564 = vmatpush1.msra.mxu0 %v555
    %565 = vmatprep.subr.mxu0 0.0
    %566 = vmatpush1.msra.mxu0 0.0
    %567 = vmatprep.subr.mxu0 0.0
    %568 = vmatpush1.msra.mxu0 0.0
    %569 = vmatprep.subr.mxu0 0.0
    %570 = vmatpush1.msra.mxu0 0.0
    %571 = vmatprep.subr.mxu0 0.0
    %572 = vmatpush1.msra.mxu0 0.0
    %573 = vmatprep.subr.mxu0 0.0
    %574 = vmatpush1.msra.mxu0 0.0
    %575 = vmatprep.subr.mxu0 0.0
    %576 = vmatpush1.msra.mxu0 0.0
    %577 = vmatprep.subr.mxu0 0.0
    %578 = vmatpush1.msra.mxu0 0.0
    %579 = vmatprep.subr.mxu0 0.0
    %580 = vmatpush1.msra.mxu0 0.0
    %581 = vmatprep.subr.mxu0 0.0
    %582 = vmatpush1.msra.mxu0 0.0
    %583 = vmatprep.subr.mxu0 0.0
    %584 = vmatpush1.msra.mxu0 0.0
    %585 = vmatprep.subr.mxu0 0.0
    %586 = vmatpush1.msra.mxu0 0.0
    %587 = vmatprep.subr.mxu0 0.0
    %588 = vmatpush1.msra.mxu0 0.0
    %589 = vmatprep.subr.mxu0 0.0
    %590 = vmatpush1.msra.mxu0 0.0
    %591 = vmatprep.subr.mxu0 0.0
    %592 = vmatpush1.msra.mxu0 0.0
    %593 = vmatprep.subr.mxu0 0.0
    %594 = vmatpush1.msra.mxu0 0.0
    %595 = vmatprep.subr.mxu0 0.0
    %596 = vmatpush1.msra.mxu0 0.0
    %597 = vmatprep.subr.mxu0 0.0
    %598 = vmatpush1.msra.mxu0 0.0
    %599 = vmatprep.subr.mxu0 0.0
    %600 = vmatpush1.msra.mxu0 0.0
    %601 = vmatprep.subr.mxu0 0.0
    %602 = vmatpush1.msra.mxu0 0.0
    %603 = vmatprep.subr.mxu0 0.0
    %604 = vmatpush1.msra.mxu0 0.0
    %605 = vmatprep.subr.mxu0 0.0
    %606 = vmatpush1.msra.mxu0 0.0
    %607 = vmatprep.subr.mxu0 0.0
    %608 = vmatpush1.msra.mxu0 0.0
    %609 = vmatprep.subr.mxu0 0.0
    %610 = vmatpush1.msra.mxu0 0.0
    %611 = vmatprep.subr.mxu0 0.0
    %612 = vmatpush1.msra.mxu0 0.0
    %613 = vmatprep.subr.mxu0 0.0
    %614 = vmatpush1.msra.mxu0 0.0
    %615 = vmatprep.subr.mxu0 0.0
    %616 = vmatpush1.msra.mxu0 0.0
    %617 = vmatprep.subr.mxu0 0.0
    %618 = vmatpush1.msra.mxu0 0.0
    %619 = vmatprep.subr.mxu0 0.0
    %620 = vmatpush1.msra.mxu0 0.0
    %621 = vmatprep.subr.mxu0 0.0
    %622 = vmatpush1.msra.mxu0 0.0
    %623 = vmatprep.subr.mxu0 0.0
    %624 = vmatpush1.msra.mxu0 0.0
    %625 = vmatprep.mubr.f32.mxu0 0.0
    %626 = vmatmul.mubr.f32.gmra.mrb[0].mxu0 %v559
    %v627 = vpop.f32.mrb[0].mxu0
    %v628 = vadd.f32 0.0, %v627
    %v629 = vpop.f32.mrb[0].mxu0
    %630 = vdwg.mxu0
    %v631 = vld [vmem:[#allocation11] sm:$0xff]
    %v632 = vld [vmem:[#allocation11 + $0x8] sm:$0xff]
    %v633 = vld [vmem:[#allocation11 + $0x10] sm:$0xff]
    %v634 = vld [vmem:[#allocation11 + $0x18] sm:$0xff]
    %v635 = vld [vmem:[#allocation11 + $0x20] sm:$0xff]
    %v636 = vld [vmem:[#allocation11 + $0x28] sm:$0xff]
    %v637 = vld [vmem:[#allocation11 + $0x30] sm:$0xff]
    %v638 = vld [vmem:[#allocation11 + $0x38] sm:$0xff]
    %v639 = vld [vmem:[#allocation11 + $0x40] sm:$0xff]
    %v640 = vld [vmem:[#allocation11 + $0x48] sm:$0xff]
    %v641 = vld [vmem:[#allocation11 + $0x50] sm:$0xff]
    %v642 = vld [vmem:[#allocation11 + $0x58] sm:$0xff]
    %v643 = vld [vmem:[#allocation11 + $0x60] sm:$0xff]
    %v644 = vld [vmem:[#allocation11 + $0x68] sm:$0xff]
    %v645 = vld [vmem:[#allocation11 + $0x70] sm:$0xff]
    %v646 = vld [vmem:[#allocation11 + $0x78] sm:$0xff]
    %v647 = vld [vmem:[#allocation11 + $0x80] sm:$0xff]
    %v648 = vld [vmem:[#allocation11 + $0x88] sm:$0xff]
    %v649 = vld [vmem:[#allocation11 + $0x90] sm:$0xff]
    %v650 = vld [vmem:[#allocation11 + $0x98] sm:$0xff]
    %v651 = vld [vmem:[#allocation11 + $0xa0] sm:$0xff]
    %v652 = vld [vmem:[#allocation11 + $0xa8] sm:$0xff]
    %v653 = vld [vmem:[#allocation11 + $0xb0] sm:$0xff]
    %v654 = vld [vmem:[#allocation11 + $0xb8] sm:$0xff]
    %v655 = vld [vmem:[#allocation11 + $0xc0] sm:$0xff]
    %v656 = vld [vmem:[#allocation11 + $0xc8] sm:$0xff]
    %v657 = vld [vmem:[#allocation11 + $0xd0] sm:$0xff]
    %v658 = vld [vmem:[#allocation11 + $0xd8] sm:$0xff]
    %v659 = vld [vmem:[#allocation11 + $0xe0] sm:$0xff]
    %v660 = vld [vmem:[#allocation11 + $0xe8] sm:$0xff]
    %v661 = vld [vmem:[#allocation11 + $0xf0] sm:$0xff]
    %v662 = vld [vmem:[#allocation11 + $0xf8] sm:$0xff]
    %v663 = vld [vmem:[%s9] sm:$0x1]
    %v665 = vlaneseq
    %v666 = vshrl.u32 %v665, 7
    %v667 = vsub.s32 0, %v666
    %v668 = vrot.slane %v663, %v667
    %670 = vmatprep.subr.mxu0 0.0
    %671 = vmatpush1.msra.mxu0 %v631
    %672 = vmatprep.subr.mxu0 0.0
    %673 = vmatpush1.msra.mxu0 %v632
    %674 = vmatprep.subr.mxu0 0.0
    %675 = vmatpush1.msra.mxu0 %v633
    %676 = vmatprep.subr.mxu0 0.0
    %677 = vmatpush1.msra.mxu0 %v634
    %678 = vmatprep.subr.mxu0 0.0
    %679 = vmatpush1.msra.mxu0 %v635
    %680 = vmatprep.subr.mxu0 0.0
    %681 = vmatpush1.msra.mxu0 %v636
    %682 = vmatprep.subr.mxu0 0.0
    %683 = vmatpush1.msra.mxu0 %v637
    %684 = vmatprep.subr.mxu0 0.0
    %685 = vmatpush1.msra.mxu0 %v638
    %686 = vmatprep.subr.mxu0 0.0
    %687 = vmatpush1.msra.mxu0 %v639
    %688 = vmatprep.subr.mxu0 0.0
    %689 = vmatpush1.msra.mxu0 %v640
    %690 = vmatprep.subr.mxu0 0.0
    %691 = vmatpush1.msra.mxu0 %v641
    %692 = vmatprep.subr.mxu0 0.0
    %693 = vmatpush1.msra.mxu0 %v642
    %694 = vmatprep.subr.mxu0 0.0
    %695 = vmatpush1.msra.mxu0 %v643
    %696 = vmatprep.subr.mxu0 0.0
    %697 = vmatpush1.msra.mxu0 %v644
    %698 = vmatprep.subr.mxu0 0.0
    %699 = vmatpush1.msra.mxu0 %v645
    %700 = vmatprep.subr.mxu0 0.0
    %701 = vmatpush1.msra.mxu0 %v646
    %702 = vmatprep.subr.mxu0 0.0
    %703 = vmatpush1.msra.mxu0 %v647
    %704 = vmatprep.subr.mxu0 0.0
    %705 = vmatpush1.msra.mxu0 %v648
    %706 = vmatprep.subr.mxu0 0.0
    %707 = vmatpush1.msra.mxu0 %v649
    %708 = vmatprep.subr.mxu0 0.0
    %709 = vmatpush1.msra.mxu0 %v650
    %710 = vmatprep.subr.mxu0 0.0
    %711 = vmatpush1.msra.mxu0 %v651
    %712 = vmatprep.subr.mxu0 0.0
    %713 = vmatpush1.msra.mxu0 %v652
    %714 = vmatprep.subr.mxu0 0.0
    %715 = vmatpush1.msra.mxu0 %v653
    %716 = vmatprep.subr.mxu0 0.0
    %717 = vmatpush1.msra.mxu0 %v654
    %718 = vmatprep.subr.mxu0 0.0
    %719 = vmatpush1.msra.mxu0 %v655
    %720 = vmatprep.subr.mxu0 0.0
    %721 = vmatpush1.msra.mxu0 %v656
    %722 = vmatprep.subr.mxu0 0.0
    %723 = vmatpush1.msra.mxu0 %v657
    %724 = vmatprep.subr.mxu0 0.0
    %725 = vmatpush1.msra.mxu0 %v658
    %726 = vmatprep.subr.mxu0 0.0
    %727 = vmatpush1.msra.mxu0 %v659
    %728 = vmatprep.subr.mxu0 0.0
    %729 = vmatpush1.msra.mxu0 %v660
    %730 = vmatprep.subr.mxu0 0.0
    %731 = vmatpush1.msra.mxu0 %v661
    %732 = vmatprep.subr.mxu0 0.0
    %733 = vmatpush1.msra.mxu0 %v662
    %734 = vmatprep.mubr.f32.mxu0 %v628
    %735 = vmatmul.mubr.f32.gmra.mrb[0].mxu0 %v554
    %v736 = vpop.f32.mrb[0].mxu0
    %v737 = vadd.f32 %v668, %v736
    %v738 = vpop.f32.mrb[0].mxu0
    %739 = vdwg.mxu0
    %740 = vst [vmem:[#allocation13] sm:$0xff] %v737
    // Predicated region
    $region66: #{tpu_custom_call.1} parent=1 // pred_check
      _
    $region67: #{tpu_custom_call.1} parent=1 // pred_check_branch
      %742 = sbr.rel (0) target = $region69
    $region68: #{tpu_custom_call.1} parent=1 // pred_region
      %s744 = ssub.s32 128, 128
      %745 = vsyncadd [#allocation4], %s744
      %s747 = sshll.u32 [#allocation13], 4
      %s748 = int_to_ptr.vmem [resolvable:$true] %s747
      %750 = dma.vmem_to_hbm [thread:$0]  %s748, 128, %s10, [#allocation4]
    $region69: #{tpu_custom_call.1} parent=1 // pred_fallthru
      _
    // Predicated region
    $region70: #{tpu_custom_call.1} parent=1 // pred_check
      _
    $region71: #{tpu_custom_call.1} parent=1 // pred_check_branch
      %752 = sbr.rel (0) target = $region73
    $region72: #{tpu_custom_call.1} parent=1 // pred_region
      %753 = dma.done [#allocation4], 128
    $region73: #{tpu_custom_call.1} parent=1 // pred_fallthru
      _
    %754 = vsyncpa [#allocation3], 1
    %755 = vsyncpa [#allocation6], 1
    %756 = vsyncpa [#allocation9], 1
    %757 = vsyncpa [#allocation12], 1
    %758 = vsyncpa [#allocation4], 1

</llo_original>
